<compile_context>
chip_gen: v5e
topology: v5e:2x2
jax: 0.10.0
libtpu: 0.0.40
codegen_flags: <defaults>
</compile_context>

<pallas_src>
import jax
import jax.numpy as jnp
from jax.experimental import pallas as pl
from jax.experimental.pallas import tpu as pltpu


def _round_up(x, m):
    return (x + m - 1) // m * m


def _leaky_relu(v, slope=0.2):
    # VPU compare+select; no transcendentals.
    return jnp.where(v > 0, v, slope * v)


def decoder_tab_kernel(x_ref,
                       w1_ref, b1_ref,
                       w2_ref, b2_ref,
                       w3_ref, b3_ref,
                       w4_ref, b4_ref,
                       o_ref):
    # All four layers fused: intermediates never leave vregs/VMEM.
    cdt = w1_ref.dtype  # MXU input dtype (bf16 or f32); accumulation always f32.

    h = jnp.dot(x_ref[...].astype(cdt), w1_ref[...],
                preferred_element_type=jnp.float32) + b1_ref[...]
    h = _leaky_relu(h)

    h = jnp.dot(h.astype(cdt), w2_ref[...],
                preferred_element_type=jnp.float32) + b2_ref[...]
    h = _leaky_relu(h)

    h = jnp.dot(h.astype(cdt), w3_ref[...],
                preferred_element_type=jnp.float32) + b3_ref[...]
    h = _leaky_relu(h)

    h = jnp.dot(h.astype(cdt), w4_ref[...],
                preferred_element_type=jnp.float32) + b4_ref[...]
    h = _leaky_relu(h)

    o_ref[...] = h.astype(o_ref.dtype)


def decoder_tab_forward(x, params, *, tb=1024,
                        compute_dtype=jnp.bfloat16, out_dtype=None):
    """x: (B, latent_dim) f32.  params: w{i}: (in, out), b{i}: (1, out).

    Returns (B, input_dim) in `out_dtype` (default: x.dtype), matching the PyTorch
    Decoder_tab forward (LeakyReLU(0.2) after every Linear, including the last).
    """
    B, latent_dim = x.shape
    input_dim = params["w4"].shape[1]
    out_dtype = x.dtype if out_dtype is None else out_dtype
    out_isz = jnp.dtype(out_dtype).itemsize
    cdt = jnp.dtype(compute_dtype)

    # --- output lane width: pad to 128 only when the extra writeback is <= 25% ---------
    if input_dim % 128 == 0:
        d_store = input_dim
    else:
        d_pad = _round_up(input_dim, 128)
        d_store = d_pad if (d_pad - input_dim) * 4 <= input_dim else input_dim

    # --- batch tiling: VMEM-budgeted tb, minimal batch pad, even grid for megacore -----
    sub = 8 * (4 // cdt.itemsize)          # 8 for f32, 16 for bf16 (sublane packing)
    # Per-step live VMEM estimate (bytes): double-buffered x + out blocks, resident
    # (double-buffered) weights/biases, and f32 intermediates with 2x headroom.
    w_elems = latent_dim * 64 + 64 * 64 + 64 * 128 + 128 * d_store
    b_elems = 64 + 64 + 128 + d_store
    w_bytes = 2 * (w_elems * cdt.itemsize + b_elems * 4)
    per_row = (2 * latent_dim * x.dtype.itemsize
               + 2 * d_store * out_isz
               + 2 * 4 * (64 + 64 + 128 + d_store))
    vmem_budget = 16 * 1024 * 1024         # fits default scoped VMEM on v5e/v6e/v7x
    tb_cap = max(sub, (vmem_budget - w_bytes) // per_row)
    tb_max = max(sub, (min(tb, tb_cap) // sub) * sub)

    n_tiles = pl.cdiv(B, tb_max)
    if B > 2 * sub:
        n_tiles = _round_up(max(n_tiles, 2), 2)   # >=2 for DMA/compute overlap, even for v7x
    tb = _round_up(pl.cdiv(B, n_tiles), sub)
    b_pad = n_tiles * tb

    x_p = x if b_pad == B else jnp.pad(x, ((0, b_pad - B), (0, 0)))

    # --- params: bf16 (or f32) MXU inputs, f32 biases --------------------------------
    w1 = params["w1"].astype(cdt)
    w2 = params["w2"].astype(cdt)
    w3 = params["w3"].astype(cdt)
    b1, b2, b3 = params["b1"], params["b2"], params["b3"]
    if d_store != input_dim:
        w4 = jnp.pad(params["w4"], ((0, 0), (0, d_store - input_dim))).astype(cdt)
        b4 = jnp.pad(params["b4"], ((0, 0), (0, d_store - input_dim)))
    else:
        w4 = params["w4"].astype(cdt)
        b4 = params["b4"]

    def const_spec(a):
        return pl.BlockSpec(a.shape, lambda i: (0, 0))   # VMEM-resident across grid

    # --- advisory cost estimate --------------------------------------------------------
    dims = [latent_dim, 64, 64, 128, input_dim]
    flops = 2 * B * sum(a * b for a, b in zip(dims[:-1], dims[1:]))
    bytes_accessed = (int(x_p.size) * x_p.dtype.itemsize
                      + b_pad * d_store * out_isz
                      + w_bytes // 2)

    out = pl.pallas_call(
        decoder_tab_kernel,
        out_shape=jax.ShapeDtypeStruct((b_pad, d_store), out_dtype),
        grid=(n_tiles,),
        in_specs=[
            pl.BlockSpec((tb, latent_dim), lambda i: (i, 0)),
            const_spec(w1), const_spec(b1),
            const_spec(w2), const_spec(b2),
            const_spec(w3), const_spec(b3),
            const_spec(w4), const_spec(b4),
        ],
        out_specs=pl.BlockSpec((tb, d_store), lambda i: (i, 0)),
        compiler_params=pltpu.CompilerParams(
            dimension_semantics=("parallel",),
            vmem_limit_bytes=32 * 1024 * 1024),
        cost_estimate=pl.CostEstimate(
            flops=int(flops), bytes_accessed=int(bytes_accessed),
            transcendentals=0),
    )(x_p, w1, b1, w2, b2, w3, b3, w4, b4)

    if d_store != input_dim:
        out = out[:, :input_dim]
    return out[:B]


def init_params(key, input_dim, latent_dim):
    """Kaiming-normal (fan_in, a=0) weights + PyTorch-default uniform biases.
    Weights stored pre-transposed as (in, out); biases as (1, out)."""
    dims = [(latent_dim, 64), (64, 64), (64, 128), (128, input_dim)]
    params = {}
    for i, (fan_in, fan_out) in enumerate(dims, start=1):
        key, kw, kb = jax.random.split(key, 3)
        std = (2.0 / fan_in) ** 0.5
        params[f"w{i}"] = std * jax.random.normal(kw, (fan_in, fan_out), jnp.float32)
        bound = 1.0 / (fan_in ** 0.5)
        params[f"b{i}"] = jax.random.uniform(
            kb, (1, fan_out), jnp.float32, minval=-bound, maxval=bound)
    return params


def reference_forward(x, params):
    h = x
    for i in range(1, 5):
        h = jnp.dot(h, params[f"w{i}"]) + params[f"b{i}"]
        h = jnp.where(h > 0, h, 0.2 * h)
    return h


if __name__ == "__main__":
    B, latent_dim, input_dim = 300, 16, 32   # non-multiple B exercises padding/tiling

    key = jax.random.PRNGKey(0)
    key, kx = jax.random.split(key)
    x = jax.random.normal(kx, (B, latent_dim), jnp.float32)
    params = init_params(key, input_dim, latent_dim)

    ref = reference_forward(x, params)

    # Default path (all gens, v5e included): bf16 MXU inputs, f32 accumulation & output.
    out_bf16 = decoder_tab_forward(x, params, compute_dtype=jnp.bfloat16)
    jax.block_until_ready(out_bf16)
    assert out_bf16.shape == (B, input_dim) and out_bf16.dtype == jnp.float32
    assert jnp.allclose(out_bf16, ref, atol=5e-2, rtol=5e-2)

    # f32 compute path: use only when accuracy actually requires it.
    out_f32 = decoder_tab_forward(x, params, compute_dtype=jnp.float32)
    jax.block_until_ready(out_f32)
    assert out_f32.shape == (B, input_dim)
    assert jnp.allclose(out_f32, ref, atol=1e-5, rtol=1e-5)

    # bf16 output stream: halves the dominant HBM writeback when downstream tolerates it.
    out_b16o = decoder_tab_forward(x, params, compute_dtype=jnp.bfloat16,
                                   out_dtype=jnp.bfloat16)
    jax.block_until_ready(out_b16o)
    assert out_b16o.dtype == jnp.bfloat16
    assert jnp.allclose(out_b16o.astype(jnp.float32), ref, atol=1e-1, rtol=1e-1)

    # Exercise the gated lane-pad path (pad fraction <= 25%): input_dim=120 -> 128 lanes.
    params120 = init_params(jax.random.PRNGKey(1), 120, latent_dim)
    ref120 = reference_forward(x, params120)
    out120 = decoder_tab_forward(x, params120, compute_dtype=jnp.float32)
    jax.block_until_ready(out120)
    assert out120.shape == (B, 120)
    assert jnp.allclose(out120, ref120, atol=1e-5, rtol=1e-5)

    print("KERNEL_OK")
</pallas_src>

<mosaic_0001>
module attributes {stable_mosaic.version = 11 : i64} {
  func.func @decoder_tab_kernel(%arg0: i32, %arg1: memref<160x16xf32, #tpu.memory_space<vmem>>, %arg2: memref<16x64xbf16, #tpu.memory_space<vmem>>, %arg3: memref<1x64xf32, #tpu.memory_space<vmem>>, %arg4: memref<64x64xbf16, #tpu.memory_space<vmem>>, %arg5: memref<1x64xf32, #tpu.memory_space<vmem>>, %arg6: memref<64x128xbf16, #tpu.memory_space<vmem>>, %arg7: memref<1x128xf32, #tpu.memory_space<vmem>>, %arg8: memref<128x32xbf16, #tpu.memory_space<vmem>>, %arg9: memref<1x32xf32, #tpu.memory_space<vmem>>, %arg10: memref<160x32xf32, #tpu.memory_space<vmem>>) attributes {dimension_semantics = [#tpu.dimension_semantics<parallel>], iteration_bounds = array<i64: 2>, scalar_prefetch = 0 : i64, scratch_operands = 0 : i64, tpu.core_type = #tpu.core_type<tc>, window_params = [{transform_indices = @transform_0, window_bounds = array<i64: 160, 16>}, {pipeline_mode = #tpu.pipeline_mode<synchronous>, transform_indices = @transform_1, window_bounds = array<i64: 16, 64>}, {pipeline_mode = #tpu.pipeline_mode<synchronous>, transform_indices = @transform_2, window_bounds = array<i64: 1, 64>}, {pipeline_mode = #tpu.pipeline_mode<synchronous>, transform_indices = @transform_3, window_bounds = array<i64: 64, 64>}, {pipeline_mode = #tpu.pipeline_mode<synchronous>, transform_indices = @transform_4, window_bounds = array<i64: 1, 64>}, {pipeline_mode = #tpu.pipeline_mode<synchronous>, transform_indices = @transform_5, window_bounds = array<i64: 64, 128>}, {pipeline_mode = #tpu.pipeline_mode<synchronous>, transform_indices = @transform_6, window_bounds = array<i64: 1, 128>}, {pipeline_mode = #tpu.pipeline_mode<synchronous>, transform_indices = @transform_7, window_bounds = array<i64: 128, 32>}, {pipeline_mode = #tpu.pipeline_mode<synchronous>, transform_indices = @transform_8, window_bounds = array<i64: 1, 32>}, {transform_indices = @transform_9, window_bounds = array<i64: 160, 32>}]} {
    %c0 = arith.constant 0 : index
    %c0_0 = arith.constant 0 : index
    %0 = vector.load %arg1[%c0, %c0_0] : memref<160x16xf32, #tpu.memory_space<vmem>>, vector<160x16xf32>
    %1 = arith.truncf %0 : vector<160x16xf32> to vector<160x16xbf16>
    %c0_1 = arith.constant 0 : index
    %c0_2 = arith.constant 0 : index
    %2 = vector.load %arg2[%c0_1, %c0_2] : memref<16x64xbf16, #tpu.memory_space<vmem>>, vector<16x64xbf16>
    %cst = arith.constant dense<0.000000e+00> : vector<160x64xf32>
    %3 = tpu.matmul %1, %2, %cst {dimension_numbers = #tpu.dot_dimension_numbers<[1], [0], [0], [1], [0, 0, 1, 1], [], []>} : vector<160x16xbf16>, vector<16x64xbf16>, vector<160x64xf32> -> vector<160x64xf32>
    %c0_3 = arith.constant 0 : index
    %c0_4 = arith.constant 0 : index
    %4 = vector.load %arg3[%c0_3, %c0_4] : memref<1x64xf32, #tpu.memory_space<vmem>>, vector<1x64xf32>
    %5 = vector.broadcast %4 : vector<1x64xf32> to vector<160x64xf32>
    %6 = arith.addf %3, %5 : vector<160x64xf32>
    %cst_5 = arith.constant 0.000000e+00 : f32
    %7 = vector.broadcast %cst_5 : f32 to vector<160x64xf32>
    %8 = arith.cmpf ogt, %6, %7 : vector<160x64xf32>
    %cst_6 = arith.constant 2.000000e-01 : f32
    %9 = vector.broadcast %cst_6 : f32 to vector<160x64xf32>
    %10 = arith.mulf %9, %6 : vector<160x64xf32>
    %11 = arith.select %8, %6, %10 : vector<160x64xi1>, vector<160x64xf32>
    %12 = arith.truncf %11 : vector<160x64xf32> to vector<160x64xbf16>
    %c0_7 = arith.constant 0 : index
    %c0_8 = arith.constant 0 : index
    %13 = vector.load %arg4[%c0_7, %c0_8] : memref<64x64xbf16, #tpu.memory_space<vmem>>, vector<64x64xbf16>
    %cst_9 = arith.constant dense<0.000000e+00> : vector<160x64xf32>
    %14 = tpu.matmul %12, %13, %cst_9 {dimension_numbers = #tpu.dot_dimension_numbers<[1], [0], [0], [1], [0, 0, 1, 1], [], []>} : vector<160x64xbf16>, vector<64x64xbf16>, vector<160x64xf32> -> vector<160x64xf32>
    %c0_10 = arith.constant 0 : index
    %c0_11 = arith.constant 0 : index
    %15 = vector.load %arg5[%c0_10, %c0_11] : memref<1x64xf32, #tpu.memory_space<vmem>>, vector<1x64xf32>
    %16 = vector.broadcast %15 : vector<1x64xf32> to vector<160x64xf32>
    %17 = arith.addf %14, %16 : vector<160x64xf32>
    %cst_12 = arith.constant 0.000000e+00 : f32
    %18 = vector.broadcast %cst_12 : f32 to vector<160x64xf32>
    %19 = arith.cmpf ogt, %17, %18 : vector<160x64xf32>
    %cst_13 = arith.constant 2.000000e-01 : f32
    %20 = vector.broadcast %cst_13 : f32 to vector<160x64xf32>
    %21 = arith.mulf %20, %17 : vector<160x64xf32>
    %22 = arith.select %19, %17, %21 : vector<160x64xi1>, vector<160x64xf32>
    %23 = arith.truncf %22 : vector<160x64xf32> to vector<160x64xbf16>
    %c0_14 = arith.constant 0 : index
    %c0_15 = arith.constant 0 : index
    %24 = vector.load %arg6[%c0_14, %c0_15] : memref<64x128xbf16, #tpu.memory_space<vmem>>, vector<64x128xbf16>
    %cst_16 = arith.constant dense<0.000000e+00> : vector<160x128xf32>
    %25 = tpu.matmul %23, %24, %cst_16 {dimension_numbers = #tpu.dot_dimension_numbers<[1], [0], [0], [1], [0, 0, 1, 1], [], []>} : vector<160x64xbf16>, vector<64x128xbf16>, vector<160x128xf32> -> vector<160x128xf32>
    %c0_17 = arith.constant 0 : index
    %c0_18 = arith.constant 0 : index
    %26 = vector.load %arg7[%c0_17, %c0_18] : memref<1x128xf32, #tpu.memory_space<vmem>>, vector<1x128xf32>
    %27 = vector.broadcast %26 : vector<1x128xf32> to vector<160x128xf32>
    %28 = arith.addf %25, %27 : vector<160x128xf32>
    %cst_19 = arith.constant 0.000000e+00 : f32
    %29 = vector.broadcast %cst_19 : f32 to vector<160x128xf32>
    %30 = arith.cmpf ogt, %28, %29 : vector<160x128xf32>
    %cst_20 = arith.constant 2.000000e-01 : f32
    %31 = vector.broadcast %cst_20 : f32 to vector<160x128xf32>
    %32 = arith.mulf %31, %28 : vector<160x128xf32>
    %33 = arith.select %30, %28, %32 : vector<160x128xi1>, vector<160x128xf32>
    %34 = arith.truncf %33 : vector<160x128xf32> to vector<160x128xbf16>
    %c0_21 = arith.constant 0 : index
    %c0_22 = arith.constant 0 : index
    %35 = vector.load %arg8[%c0_21, %c0_22] : memref<128x32xbf16, #tpu.memory_space<vmem>>, vector<128x32xbf16>
    %cst_23 = arith.constant dense<0.000000e+00> : vector<160x32xf32>
    %36 = tpu.matmul %34, %35, %cst_23 {dimension_numbers = #tpu.dot_dimension_numbers<[1], [0], [0], [1], [0, 0, 1, 1], [], []>} : vector<160x128xbf16>, vector<128x32xbf16>, vector<160x32xf32> -> vector<160x32xf32>
    %c0_24 = arith.constant 0 : index
    %c0_25 = arith.constant 0 : index
    %37 = vector.load %arg9[%c0_24, %c0_25] : memref<1x32xf32, #tpu.memory_space<vmem>>, vector<1x32xf32>
    %38 = vector.broadcast %37 : vector<1x32xf32> to vector<160x32xf32>
    %39 = arith.addf %36, %38 : vector<160x32xf32>
    %cst_26 = arith.constant 0.000000e+00 : f32
    %40 = vector.broadcast %cst_26 : f32 to vector<160x32xf32>
    %41 = arith.cmpf ogt, %39, %40 : vector<160x32xf32>
    %cst_27 = arith.constant 2.000000e-01 : f32
    %42 = vector.broadcast %cst_27 : f32 to vector<160x32xf32>
    %43 = arith.mulf %42, %39 : vector<160x32xf32>
    %44 = arith.select %41, %39, %43 : vector<160x32xi1>, vector<160x32xf32>
    %c0_28 = arith.constant 0 : index
    %c0_29 = arith.constant 0 : index
    %45 = vector.load %arg10[%c0_28, %c0_29] : memref<160x32xf32, #tpu.memory_space<vmem>>, vector<160x32xf32>
    tpu.vector_store %arg10[%c0_28, %c0_29], %44 {strides = array<i32>} : memref<160x32xf32, #tpu.memory_space<vmem>>, vector<160x32xf32>,
    return
  }
  func.func @transform_0(%arg0: i32) -> (i32, i32) {
    %c0_i32 = arith.constant 0 : i32
    %c0_i32_0 = arith.constant 0 : i32
    return %arg0, %c0_i32 : i32, i32
  }
  func.func @transform_1(%arg0: i32) -> (i32, i32) {
    %c0_i32 = arith.constant 0 : i32
    %c0_i32_0 = arith.constant 0 : i32
    %c0_i32_1 = arith.constant 0 : i32
    return %c0_i32, %c0_i32_0 : i32, i32
  }
  func.func @transform_2(%arg0: i32) -> (i32, i32) {
    %c0_i32 = arith.constant 0 : i32
    %c0_i32_0 = arith.constant 0 : i32
    %c0_i32_1 = arith.constant 0 : i32
    return %c0_i32, %c0_i32_0 : i32, i32
  }
  func.func @transform_3(%arg0: i32) -> (i32, i32) {
    %c0_i32 = arith.constant 0 : i32
    %c0_i32_0 = arith.constant 0 : i32
    %c0_i32_1 = arith.constant 0 : i32
    return %c0_i32, %c0_i32_0 : i32, i32
  }
  func.func @transform_4(%arg0: i32) -> (i32, i32) {
    %c0_i32 = arith.constant 0 : i32
    %c0_i32_0 = arith.constant 0 : i32
    %c0_i32_1 = arith.constant 0 : i32
    return %c0_i32, %c0_i32_0 : i32, i32
  }
  func.func @transform_5(%arg0: i32) -> (i32, i32) {
    %c0_i32 = arith.constant 0 : i32
    %c0_i32_0 = arith.constant 0 : i32
    %c0_i32_1 = arith.constant 0 : i32
    return %c0_i32, %c0_i32_0 : i32, i32
  }
  func.func @transform_6(%arg0: i32) -> (i32, i32) {
    %c0_i32 = arith.constant 0 : i32
    %c0_i32_0 = arith.constant 0 : i32
    %c0_i32_1 = arith.constant 0 : i32
    return %c0_i32, %c0_i32_0 : i32, i32
  }
  func.func @transform_7(%arg0: i32) -> (i32, i32) {
    %c0_i32 = arith.constant 0 : i32
    %c0_i32_0 = arith.constant 0 : i32
    %c0_i32_1 = arith.constant 0 : i32
    return %c0_i32, %c0_i32_0 : i32, i32
  }
  func.func @transform_8(%arg0: i32) -> (i32, i32) {
    %c0_i32 = arith.constant 0 : i32
    %c0_i32_0 = arith.constant 0 : i32
    %c0_i32_1 = arith.constant 0 : i32
    return %c0_i32, %c0_i32_0 : i32, i32
  }
  func.func @transform_9(%arg0: i32) -> (i32, i32) {
    %c0_i32 = arith.constant 0 : i32
    %c0_i32_0 = arith.constant 0 : i32
    return %arg0, %c0_i32 : i32, i32
  }
}

</mosaic_0001>

<llo_original>
// kernel: tpu_custom_call.1
$region0: #{tpu_custom_call.1}
  #allocation0 [shape = 'u32[]', space=smem, size = 0x4, offset = 0x4, fixed_abs, tag = 'smem constant byte address 0x4 - core index']
  #allocation1 [shape = 'u32[72,128]{1,0:T(1,128)}', space=vmem, size = 0x9000, scoped, tag = 'internal scratch']
  %s0 = inlined_call_operand.vmem [shape: f32[320,16], index: 0, kind: input, shape index: {}]
  %s1 = inlined_call_operand.vmem [shape: bf16[16,64], index: 1, kind: input, shape index: {}]
  %s2 = inlined_call_operand.vmem [shape: f32[1,64], index: 2, kind: input, shape index: {}]
  %s3 = inlined_call_operand.vmem [shape: bf16[64,64], index: 3, kind: input, shape index: {}]
  %s4 = inlined_call_operand.vmem [shape: f32[1,64], index: 4, kind: input, shape index: {}]
  %s5 = inlined_call_operand.vmem [shape: bf16[64,128], index: 5, kind: input, shape index: {}]
  %s6 = inlined_call_operand.vmem [shape: f32[1,128], index: 6, kind: input, shape index: {}]
  %s7 = inlined_call_operand.vmem [shape: bf16[128,32], index: 7, kind: input, shape index: {}]
  %s8 = inlined_call_operand.vmem [shape: f32[1,32], index: 8, kind: input, shape index: {}]
  %s9 = inlined_call_operand.vmem [shape: f32[320,32], index: 9, kind: output, shape index: {}]
  %s10 = sld [smem:[#allocation0]]
  $region69: #{tpu_custom_call.1} parent=0
    _
  %s12 = ssub.s32 1, %s10
  %s13 = scalar_select 0, %s12, %s10
  loop: start=0, step=1, limit=4
  $region2: #{tpu_custom_call.1} parent=0 // loop_pre_header
    _
  $region3: #{tpu_custom_call.1} parent=0 // loop_header
    %s15 = sphi 0, %s19
    %p16 = scmp.ge.s32.totalorder %s15, 4
    %s25 = sphi 0, %s27
    %s28 = sphi 0, %s25
    %s29 = sphi 0, %s28
    %s45 = sphi 0, %s29
    %s49 = sphi 0, %s49
    %s51 = sphi 0, %s49
    %s52 = sphi 0, %s51
    %s66 = sphi 0, %s52
    %s70 = sphi 0, %s70
    %s72 = sphi 0, %s70
    %s73 = sphi 0, %s72
    %s87 = sphi 0, %s73
    %s91 = sphi 0, %s91
    %s93 = sphi 0, %s91
    %s94 = sphi 0, %s93
    %s108 = sphi 0, %s94
    %s112 = sphi 0, %s112
    %s114 = sphi 0, %s112
    %s115 = sphi 0, %s114
    %s129 = sphi 0, %s115
    %s133 = sphi 0, %s133
    %s135 = sphi 0, %s133
    %s136 = sphi 0, %s135
    %s150 = sphi 0, %s136
    %s154 = sphi 0, %s154
    %s156 = sphi 0, %s154
    %s157 = sphi 0, %s156
    %s171 = sphi 0, %s157
    %s175 = sphi 0, %s175
    %s177 = sphi 0, %s175
    %s178 = sphi 0, %s177
    %s192 = sphi 0, %s178
    %s196 = sphi 0, %s196
    %s198 = sphi 0, %s196
    %s199 = sphi 0, %s198
    %s213 = sphi 0, %s199
    %s219 = sphi 0, %s221
    %s222 = sphi 0, %s219
    %s223 = sphi 0, %s222
    %s239 = sphi 0, %s223
  $region4: #{tpu_custom_call.1} parent=0 // loop_header_branch
    %18 = sbr.rel (%p16) target = $region8
  $region5: #{tpu_custom_call.1} parent=0 // loop_body
    %s20 = ssub.s32 %s15, 1
    %s21 = ssub.s32 %s15, 2
    %s22 = sadd.s32 %s15, 1
    %s23 = ssub.s32 %s15, %s22
    %p24 = scmp.eq.s32.totalorder %s23, 0
    %s26 = sadd.s32 %s25, 1
    %s27 = scalar_select %p24, %s25, %s26
    %p30 = pneg %p24
    %p31 = scmp.eq.s32.totalorder %s15, 1
    %p32 = por %p30, %p31
    %p33 = scmp.ne.s32.totalorder %s25, %s28
    %p34 = scmp.eq.s32.totalorder %s15, 0
    %p35 = por %p33, %p34
    %p36 = scmp.ne.s32.totalorder %s25, %s28
    %p37 = scmp.eq.s32.totalorder %s20, 1
    %p38 = por %p36, %p37
    %p39 = scmp.ne.s32.totalorder %s28, %s29
    %p40 = scmp.eq.s32.totalorder %s20, 0
    %p41 = por %p39, %p40
    %p42 = scmp.ne.s32.totalorder %s28, %s29
    %p43 = scmp.eq.s32.totalorder %s21, 1
    %p44 = por %p42, %p43
    %p46 = scmp.ne.s32.totalorder %s29, %s45
    %p47 = scmp.eq.s32.totalorder %s21, 0
    %p48 = por %p46, %p47
    %s50 = sadd.s32 %s49, 1
    %p53 = scmp.eq.s32.totalorder %s15, 1
    %p54 = scmp.ne.s32.totalorder %s49, %s51
    %p55 = scmp.eq.s32.totalorder %s15, 0
    %p56 = por %p54, %p55
    %p57 = scmp.ne.s32.totalorder %s49, %s51
    %p58 = scmp.eq.s32.totalorder %s20, 1
    %p59 = por %p57, %p58
    %p60 = scmp.ne.s32.totalorder %s51, %s52
    %p61 = scmp.eq.s32.totalorder %s20, 0
    %p62 = por %p60, %p61
    %p63 = scmp.ne.s32.totalorder %s51, %s52
    %p64 = scmp.eq.s32.totalorder %s21, 1
    %p65 = por %p63, %p64
    %p67 = scmp.ne.s32.totalorder %s52, %s66
    %p68 = scmp.eq.s32.totalorder %s21, 0
    %p69 = por %p67, %p68
    %s71 = sadd.s32 %s70, 1
    %p74 = scmp.eq.s32.totalorder %s15, 1
    %p75 = scmp.ne.s32.totalorder %s70, %s72
    %p76 = scmp.eq.s32.totalorder %s15, 0
    %p77 = por %p75, %p76
    %p78 = scmp.ne.s32.totalorder %s70, %s72
    %p79 = scmp.eq.s32.totalorder %s20, 1
    %p80 = por %p78, %p79
    %p81 = scmp.ne.s32.totalorder %s72, %s73
    %p82 = scmp.eq.s32.totalorder %s20, 0
    %p83 = por %p81, %p82
    %p84 = scmp.ne.s32.totalorder %s72, %s73
    %p85 = scmp.eq.s32.totalorder %s21, 1
    %p86 = por %p84, %p85
    %p88 = scmp.ne.s32.totalorder %s73, %s87
    %p89 = scmp.eq.s32.totalorder %s21, 0
    %p90 = por %p88, %p89
    %s92 = sadd.s32 %s91, 1
    %p95 = scmp.eq.s32.totalorder %s15, 1
    %p96 = scmp.ne.s32.totalorder %s91, %s93
    %p97 = scmp.eq.s32.totalorder %s15, 0
    %p98 = por %p96, %p97
    %p99 = scmp.ne.s32.totalorder %s91, %s93
    %p100 = scmp.eq.s32.totalorder %s20, 1
    %p101 = por %p99, %p100
    %p102 = scmp.ne.s32.totalorder %s93, %s94
    %p103 = scmp.eq.s32.totalorder %s20, 0
    %p104 = por %p102, %p103
    %p105 = scmp.ne.s32.totalorder %s93, %s94
    %p106 = scmp.eq.s32.totalorder %s21, 1
    %p107 = por %p105, %p106
    %p109 = scmp.ne.s32.totalorder %s94, %s108
    %p110 = scmp.eq.s32.totalorder %s21, 0
    %p111 = por %p109, %p110
    %s113 = sadd.s32 %s112, 1
    %p116 = scmp.eq.s32.totalorder %s15, 1
    %p117 = scmp.ne.s32.totalorder %s112, %s114
    %p118 = scmp.eq.s32.totalorder %s15, 0
    %p119 = por %p117, %p118
    %p120 = scmp.ne.s32.totalorder %s112, %s114
    %p121 = scmp.eq.s32.totalorder %s20, 1
    %p122 = por %p120, %p121
    %p123 = scmp.ne.s32.totalorder %s114, %s115
    %p124 = scmp.eq.s32.totalorder %s20, 0
    %p125 = por %p123, %p124
    %p126 = scmp.ne.s32.totalorder %s114, %s115
    %p127 = scmp.eq.s32.totalorder %s21, 1
    %p128 = por %p126, %p127
    %p130 = scmp.ne.s32.totalorder %s115, %s129
    %p131 = scmp.eq.s32.totalorder %s21, 0
    %p132 = por %p130, %p131
    %s134 = sadd.s32 %s133, 1
    %p137 = scmp.eq.s32.totalorder %s15, 1
    %p138 = scmp.ne.s32.totalorder %s133, %s135
    %p139 = scmp.eq.s32.totalorder %s15, 0
    %p140 = por %p138, %p139
    %p141 = scmp.ne.s32.totalorder %s133, %s135
    %p142 = scmp.eq.s32.totalorder %s20, 1
    %p143 = por %p141, %p142
    %p144 = scmp.ne.s32.totalorder %s135, %s136
    %p145 = scmp.eq.s32.totalorder %s20, 0
    %p146 = por %p144, %p145
    %p147 = scmp.ne.s32.totalorder %s135, %s136
    %p148 = scmp.eq.s32.totalorder %s21, 1
    %p149 = por %p147, %p148
    %p151 = scmp.ne.s32.totalorder %s136, %s150
    %p152 = scmp.eq.s32.totalorder %s21, 0
    %p153 = por %p151, %p152
    %s155 = sadd.s32 %s154, 1
    %p158 = scmp.eq.s32.totalorder %s15, 1
    %p159 = scmp.ne.s32.totalorder %s154, %s156
    %p160 = scmp.eq.s32.totalorder %s15, 0
    %p161 = por %p159, %p160
    %p162 = scmp.ne.s32.totalorder %s154, %s156
    %p163 = scmp.eq.s32.totalorder %s20, 1
    %p164 = por %p162, %p163
    %p165 = scmp.ne.s32.totalorder %s156, %s157
    %p166 = scmp.eq.s32.totalorder %s20, 0
    %p167 = por %p165, %p166
    %p168 = scmp.ne.s32.totalorder %s156, %s157
    %p169 = scmp.eq.s32.totalorder %s21, 1
    %p170 = por %p168, %p169
    %p172 = scmp.ne.s32.totalorder %s157, %s171
    %p173 = scmp.eq.s32.totalorder %s21, 0
    %p174 = por %p172, %p173
    %s176 = sadd.s32 %s175, 1
    %p179 = scmp.eq.s32.totalorder %s15, 1
    %p180 = scmp.ne.s32.totalorder %s175, %s177
    %p181 = scmp.eq.s32.totalorder %s15, 0
    %p182 = por %p180, %p181
    %p183 = scmp.ne.s32.totalorder %s175, %s177
    %p184 = scmp.eq.s32.totalorder %s20, 1
    %p185 = por %p183, %p184
    %p186 = scmp.ne.s32.totalorder %s177, %s178
    %p187 = scmp.eq.s32.totalorder %s20, 0
    %p188 = por %p186, %p187
    %p189 = scmp.ne.s32.totalorder %s177, %s178
    %p190 = scmp.eq.s32.totalorder %s21, 1
    %p191 = por %p189, %p190
    %p193 = scmp.ne.s32.totalorder %s178, %s192
    %p194 = scmp.eq.s32.totalorder %s21, 0
    %p195 = por %p193, %p194
    %s197 = sadd.s32 %s196, 1
    %p200 = scmp.eq.s32.totalorder %s15, 1
    %p201 = scmp.ne.s32.totalorder %s196, %s198
    %p202 = scmp.eq.s32.totalorder %s15, 0
    %p203 = por %p201, %p202
    %p204 = scmp.ne.s32.totalorder %s196, %s198
    %p205 = scmp.eq.s32.totalorder %s20, 1
    %p206 = por %p204, %p205
    %p207 = scmp.ne.s32.totalorder %s198, %s199
    %p208 = scmp.eq.s32.totalorder %s20, 0
    %p209 = por %p207, %p208
    %p210 = scmp.ne.s32.totalorder %s198, %s199
    %p211 = scmp.eq.s32.totalorder %s21, 1
    %p212 = por %p210, %p211
    %p214 = scmp.ne.s32.totalorder %s199, %s213
    %p215 = scmp.eq.s32.totalorder %s21, 0
    %p216 = por %p214, %p215
    %s217 = ssub.s32 %s15, %s22
    %p218 = scmp.eq.s32.totalorder %s217, 0
    %s220 = sadd.s32 %s219, 1
    %s221 = scalar_select %p218, %s219, %s220
    %p224 = pneg %p218
    %p225 = scmp.eq.s32.totalorder %s15, 1
    %p226 = por %p224, %p225
    %p227 = scmp.ne.s32.totalorder %s219, %s222
    %p228 = scmp.eq.s32.totalorder %s15, 0
    %p229 = por %p227, %p228
    %p230 = scmp.ne.s32.totalorder %s219, %s222
    %p231 = scmp.eq.s32.totalorder %s20, 1
    %p232 = por %p230, %p231
    %p233 = scmp.ne.s32.totalorder %s222, %s223
    %p234 = scmp.eq.s32.totalorder %s20, 0
    %p235 = por %p233, %p234
    %p236 = scmp.ne.s32.totalorder %s222, %s223
    %p237 = scmp.eq.s32.totalorder %s21, 1
    %p238 = por %p236, %p237
    %p240 = scmp.ne.s32.totalorder %s223, %s239
    %p241 = scmp.eq.s32.totalorder %s21, 0
    %p242 = por %p240, %p241
    %p243 = scmp.le.s32.totalorder 1, %s15
    %p244 = scmp.lt.s32.totalorder %s15, 3
    %p245 = pnand %p243, %p244
    %p246 = pneg %p245
    // Predicated region
    $region9: #{tpu_custom_call.1} parent=5 // pred_check
      _
    $region10: #{tpu_custom_call.1} parent=5 // pred_check_branch
      %248 = sbr.rel (%p245) target = $region12
    $region11: #{tpu_custom_call.1} parent=5 // pred_region
      %s249 = ssub.s32 %s15, 1
      // Predicated region
      $region13: #{tpu_custom_call.1} parent=11 // pred_check
        %p250 = pneg %p62
      $region14: #{tpu_custom_call.1} parent=11 // pred_check_branch
        %252 = sbr.rel (%p250) target = $region16
      $region15: #{tpu_custom_call.1} parent=11 // pred_region
        _
      $region16: #{tpu_custom_call.1} parent=11 // pred_fallthru
        _
      // Predicated region
      $region17: #{tpu_custom_call.1} parent=11 // pred_check
        %p253 = pneg %p83
      $region18: #{tpu_custom_call.1} parent=11 // pred_check_branch
        %255 = sbr.rel (%p253) target = $region20
      $region19: #{tpu_custom_call.1} parent=11 // pred_region
        _
      $region20: #{tpu_custom_call.1} parent=11 // pred_fallthru
        _
      // Predicated region
      $region21: #{tpu_custom_call.1} parent=11 // pred_check
        %p256 = pneg %p104
      $region22: #{tpu_custom_call.1} parent=11 // pred_check_branch
        %258 = sbr.rel (%p256) target = $region24
      $region23: #{tpu_custom_call.1} parent=11 // pred_region
        _
      $region24: #{tpu_custom_call.1} parent=11 // pred_fallthru
        _
      // Predicated region
      $region25: #{tpu_custom_call.1} parent=11 // pred_check
        %p259 = pneg %p125
      $region26: #{tpu_custom_call.1} parent=11 // pred_check_branch
        %261 = sbr.rel (%p259) target = $region28
      $region27: #{tpu_custom_call.1} parent=11 // pred_region
        _
      $region28: #{tpu_custom_call.1} parent=11 // pred_fallthru
        _
      // Predicated region
      $region29: #{tpu_custom_call.1} parent=11 // pred_check
        %p262 = pneg %p146
      $region30: #{tpu_custom_call.1} parent=11 // pred_check_branch
        %264 = sbr.rel (%p262) target = $region32
      $region31: #{tpu_custom_call.1} parent=11 // pred_region
        _
      $region32: #{tpu_custom_call.1} parent=11 // pred_fallthru
        _
      // Predicated region
      $region33: #{tpu_custom_call.1} parent=11 // pred_check
        %p265 = pneg %p167
      $region34: #{tpu_custom_call.1} parent=11 // pred_check_branch
        %267 = sbr.rel (%p265) target = $region36
      $region35: #{tpu_custom_call.1} parent=11 // pred_region
        _
      $region36: #{tpu_custom_call.1} parent=11 // pred_fallthru
        _
      // Predicated region
      $region37: #{tpu_custom_call.1} parent=11 // pred_check
        %p268 = pneg %p188
      $region38: #{tpu_custom_call.1} parent=11 // pred_check_branch
        %270 = sbr.rel (%p268) target = $region40
      $region39: #{tpu_custom_call.1} parent=11 // pred_region
        _
      $region40: #{tpu_custom_call.1} parent=11 // pred_fallthru
        _
      // Predicated region
      $region41: #{tpu_custom_call.1} parent=11 // pred_check
        %p271 = pneg %p209
      $region42: #{tpu_custom_call.1} parent=11 // pred_check_branch
        %273 = sbr.rel (%p271) target = $region44
      $region43: #{tpu_custom_call.1} parent=11 // pred_region
        _
      $region44: #{tpu_custom_call.1} parent=11 // pred_fallthru
        _
    $region12: #{tpu_custom_call.1} parent=5 // pred_fallthru
      _
    %p274 = scmp.lt.s32.totalorder %s15, 2
    // Predicated region
    $region45: #{tpu_custom_call.1} parent=5 // pred_check
      %p275 = pneg %p274
    $region46: #{tpu_custom_call.1} parent=5 // pred_check_branch
      %277 = sbr.rel (%p275) target = $region48
    $region47: #{tpu_custom_call.1} parent=5 // pred_region
      // Predicated region
      $region49: #{tpu_custom_call.1} parent=47 // pred_check
        %p278 = pneg %p35
      $region50: #{tpu_custom_call.1} parent=47 // pred_check_branch
        %280 = sbr.rel (%p278) target = $region52
      $region51: #{tpu_custom_call.1} parent=47 // pred_region
        %s281 = smul.u32 20, %s15
        %p282 = scmp.lt.s32.totalorder %s281, 39
        %s283 = scalar_select %p282, %s281, 39
        %s284 = smul.addr %s283, 8
        %s285 = scalar_lea.vmem %s0, %s284
        %s286 = smul.u32 20, %s15
      $region52: #{tpu_custom_call.1} parent=47 // pred_fallthru
        _
    $region48: #{tpu_custom_call.1} parent=5 // pred_fallthru
      _
    %p287 = scmp.le.s32.totalorder 1, %s15
    %p288 = scmp.lt.s32.totalorder %s15, 3
    %p289 = pnand %p287, %p288
    %p290 = pneg %p289
    // Predicated region
    $region53: #{tpu_custom_call.1} parent=5 // pred_check
      _
    $region54: #{tpu_custom_call.1} parent=5 // pred_check_branch
      %292 = sbr.rel (%p289) target = $region56
    $region55: #{tpu_custom_call.1} parent=5 // pred_region
      %s293 = ssub.s32 %s15, 1
      %s294 = smul.u32 20, %s20
      %p295 = scmp.lt.s32.totalorder %s294, 39
      %s296 = scalar_select %p295, %s294, 39
      %s297 = smul.addr %s296, 8
      %s298 = scalar_lea.vmem %s0, %s297
      %p299 = pneg %p41
      %p300 = pneg %p38
      %p301 = pneg %p62
      %p302 = pneg %p59
      %p303 = pneg %p83
      %p304 = pneg %p80
      %p305 = pneg %p104
      %p306 = pneg %p101
      %p307 = pneg %p125
      %p308 = pneg %p122
      %p309 = pneg %p146
      %p310 = pneg %p143
      %p311 = pneg %p167
      %p312 = pneg %p164
      %p313 = pneg %p188
      %p314 = pneg %p185
      %p315 = pneg %p209
      %p316 = pneg %p206
      %p317 = pneg %p235
      %p318 = pneg %p232
      %s319 = smul.u32 20, %s20
      %p320 = scmp.lt.s32.totalorder %s319, 39
      %s321 = scalar_select %p320, %s319, 39
      %s322 = smul.addr %s321, 8
      %s323 = scalar_lea.vmem %s9, %s322
      %s324 = smul.u32 20, %s20
      %p325 = scmp.lt.s32.totalorder %s324, 39
      %s326 = scalar_select %p325, %s324, 39
      %s327 = smul.addr %s326, 8
      %s328 = scalar_lea.vmem %s0, %s327
      %s329 = smul.u32 20, %s20
      %s330 = smul.u32 20, %s20
      %p331 = scmp.lt.s32.totalorder %s330, 39
      %s332 = scalar_select %p331, %s330, 39
      %s333 = smul.addr %s332, 8
      %s334 = scalar_lea.vmem %s9, %s333
      %s335 = smul.u32 20, %s20
      %v337 = vld [vmem:[%s328] sm:$0xff]
      %v338 = vld [vmem:[%s328 + $0x8] sm:$0xff]
      %v339 = vld [vmem:[%s328 + $0x10] sm:$0xff]
      %v340 = vld [vmem:[%s328 + $0x18] sm:$0xff]
      %v341 = vld [vmem:[%s328 + $0x20] sm:$0xff]
      %v342 = vld [vmem:[%s328 + $0x28] sm:$0xff]
      %v343 = vld [vmem:[%s328 + $0x30] sm:$0xff]
      %v344 = vld [vmem:[%s328 + $0x38] sm:$0xff]
      %v345 = vld [vmem:[%s328 + $0x40] sm:$0xff]
      %v346 = vld [vmem:[%s328 + $0x48] sm:$0xff]
      %v347 = vld [vmem:[%s328 + $0x50] sm:$0xff]
      %v348 = vld [vmem:[%s328 + $0x58] sm:$0xff]
      %v349 = vld [vmem:[%s328 + $0x60] sm:$0xff]
      %v350 = vld [vmem:[%s328 + $0x68] sm:$0xff]
      %v351 = vld [vmem:[%s328 + $0x70] sm:$0xff]
      %v352 = vld [vmem:[%s328 + $0x78] sm:$0xff]
      %v353 = vld [vmem:[%s328 + $0x80] sm:$0xff]
      %v354 = vld [vmem:[%s328 + $0x88] sm:$0xff]
      %v355 = vld [vmem:[%s328 + $0x90] sm:$0xff]
      %v356 = vld [vmem:[%s328 + $0x98] sm:$0xff]
      %v357 = vpack.c.bf16 %v338, %v337
      %v358 = vpack.c.bf16 %v340, %v339
      %v359 = vpack.c.bf16 %v342, %v341
      %v360 = vpack.c.bf16 %v344, %v343
      %v361 = vpack.c.bf16 %v346, %v345
      %v362 = vpack.c.bf16 %v348, %v347
      %v363 = vpack.c.bf16 %v350, %v349
      %v364 = vpack.c.bf16 %v352, %v351
      %v365 = vpack.c.bf16 %v354, %v353
      %v366 = vpack.c.bf16 %v356, %v355
      %v367 = vld [vmem:[%s1] sm:$0xf]
      %v368 = vld [vmem:[%s1 + $0x4] sm:$0xf]
      %v369 = vld [vmem:[%s2] sm:$0x1]
      %v371 = vperm.slane %v369, 0
      %v375 = vunpack.c.l.b16 %v367
      %v376 = vunpack.c.l.b16 %v368
      %v377 = vpack.c.b16 %v376, %v375
      %vm379 = vcmask 130048
      %v381 = vsel %vm379, %v357, 0
      %v384 = vsel %vm379, %v358, 0
      %v387 = vsel %vm379, %v359, 0
      %v390 = vsel %vm379, %v360, 0
      %v393 = vsel %vm379, %v361, 0
      %v396 = vsel %vm379, %v362, 0
      %v399 = vsel %vm379, %v363, 0
      %v402 = vsel %vm379, %v364, 0
      %v405 = vsel %vm379, %v365, 0
      %v408 = vsel %vm379, %v366, 0
      %410 = vmatpush.bf16.msra.mxu0 0
      %411 = vmatpush.bf16.msra.mxu0 0
      %412 = vmatpush.bf16.msra.mxu0 0
      %413 = vmatpush.bf16.msra.mxu0 0
      %414 = vmatpush.bf16.msra.mxu0 0
      %415 = vmatpush.bf16.msra.mxu0 0
      %416 = vmatpush.bf16.msra.mxu0 0
      %417 = vmatpush.bf16.msra.mxu0 %v377
      %418 = vmatmul.bf16.gmra.mxu0 %v381
      %v419 = vpop.f32.mrf.mxu0
      %v420 = vadd.f32 %v371, %v419
      %v421 = vpop.f32.mrf.mxu0
      %v422 = vadd.f32 %v371, %v421
      %423 = vmatmul.bf16.gmra.mxu0 %v384
      %v424 = vpop.f32.mrf.mxu0
      %v425 = vadd.f32 %v371, %v424
      %v426 = vpop.f32.mrf.mxu0
      %v427 = vadd.f32 %v371, %v426
      %428 = vmatmul.bf16.gmra.mxu0 %v387
      %v429 = vpop.f32.mrf.mxu0
      %v430 = vadd.f32 %v371, %v429
      %v431 = vpop.f32.mrf.mxu0
      %v432 = vadd.f32 %v371, %v431
      %433 = vmatmul.bf16.gmra.mxu0 %v390
      %v434 = vpop.f32.mrf.mxu0
      %v435 = vadd.f32 %v371, %v434
      %v436 = vpop.f32.mrf.mxu0
      %v437 = vadd.f32 %v371, %v436
      %438 = vmatmul.bf16.gmra.mxu0 %v393
      %v439 = vpop.f32.mrf.mxu0
      %v440 = vadd.f32 %v371, %v439
      %v441 = vpop.f32.mrf.mxu0
      %v442 = vadd.f32 %v371, %v441
      %443 = vmatmul.bf16.gmra.mxu0 %v396
      %v444 = vpop.f32.mrf.mxu0
      %v445 = vadd.f32 %v371, %v444
      %v446 = vpop.f32.mrf.mxu0
      %v447 = vadd.f32 %v371, %v446
      %448 = vmatmul.bf16.gmra.mxu0 %v399
      %v449 = vpop.f32.mrf.mxu0
      %v450 = vadd.f32 %v371, %v449
      %v451 = vpop.f32.mrf.mxu0
      %v452 = vadd.f32 %v371, %v451
      %453 = vmatmul.bf16.gmra.mxu0 %v402
      %v454 = vpop.f32.mrf.mxu0
      %v455 = vadd.f32 %v371, %v454
      %v456 = vpop.f32.mrf.mxu0
      %v457 = vadd.f32 %v371, %v456
      %458 = vmatmul.bf16.gmra.mxu0 %v405
      %v459 = vpop.f32.mrf.mxu0
      %v460 = vadd.f32 %v371, %v459
      %v461 = vpop.f32.mrf.mxu0
      %v462 = vadd.f32 %v371, %v461
      %463 = vmatmul.bf16.gmra.mxu0 %v408
      %v464 = vpop.f32.mrf.mxu0
      %v465 = vadd.f32 %v371, %v464
      %v466 = vpop.f32.mrf.mxu0
      %v467 = vadd.f32 %v371, %v466
      %468 = vdwg.mxu0
      %vm469 = vcmp.gt.f32.partialorder %v420, 0.0
      %vm470 = vcmp.gt.f32.partialorder %v422, 0.0
      %vm471 = vcmp.gt.f32.partialorder %v425, 0.0
      %vm472 = vcmp.gt.f32.partialorder %v427, 0.0
      %vm473 = vcmp.gt.f32.partialorder %v430, 0.0
      %vm474 = vcmp.gt.f32.partialorder %v432, 0.0
      %vm475 = vcmp.gt.f32.partialorder %v435, 0.0
      %vm476 = vcmp.gt.f32.partialorder %v437, 0.0
      %vm477 = vcmp.gt.f32.partialorder %v440, 0.0
      %vm478 = vcmp.gt.f32.partialorder %v442, 0.0
      %vm479 = vcmp.gt.f32.partialorder %v445, 0.0
      %vm480 = vcmp.gt.f32.partialorder %v447, 0.0
      %vm481 = vcmp.gt.f32.partialorder %v450, 0.0
      %vm482 = vcmp.gt.f32.partialorder %v452, 0.0
      %vm483 = vcmp.gt.f32.partialorder %v455, 0.0
      %vm484 = vcmp.gt.f32.partialorder %v457, 0.0
      %vm485 = vcmp.gt.f32.partialorder %v460, 0.0
      %vm486 = vcmp.gt.f32.partialorder %v462, 0.0
      %vm487 = vcmp.gt.f32.partialorder %v465, 0.0
      %vm488 = vcmp.gt.f32.partialorder %v467, 0.0
      %v489 = vmul.f32 %v420, 0.2
      %v490 = vmul.f32 %v422, 0.2
      %v491 = vmul.f32 %v425, 0.2
      %v492 = vmul.f32 %v427, 0.2
      %v493 = vmul.f32 %v430, 0.2
      %v494 = vmul.f32 %v432, 0.2
      %v495 = vmul.f32 %v435, 0.2
      %v496 = vmul.f32 %v437, 0.2
      %v497 = vmul.f32 %v440, 0.2
      %v498 = vmul.f32 %v442, 0.2
      %v499 = vmul.f32 %v445, 0.2
      %v500 = vmul.f32 %v447, 0.2
      %v501 = vmul.f32 %v450, 0.2
      %v502 = vmul.f32 %v452, 0.2
      %v503 = vmul.f32 %v455, 0.2
      %v504 = vmul.f32 %v457, 0.2
      %v505 = vmul.f32 %v460, 0.2
      %v506 = vmul.f32 %v462, 0.2
      %v507 = vmul.f32 %v465, 0.2
      %v508 = vmul.f32 %v467, 0.2
      %v509 = vsel %vm469, %v420, %v489
      %v510 = vsel %vm470, %v422, %v490
      %v511 = vsel %vm471, %v425, %v491
      %v512 = vsel %vm472, %v427, %v492
      %v513 = vsel %vm473, %v430, %v493
      %v514 = vsel %vm474, %v432, %v494
      %v515 = vsel %vm475, %v435, %v495
      %v516 = vsel %vm476, %v437, %v496
      %v517 = vsel %vm477, %v440, %v497
      %v518 = vsel %vm478, %v442, %v498
      %v519 = vsel %vm479, %v445, %v499
      %v520 = vsel %vm480, %v447, %v500
      %v521 = vsel %vm481, %v450, %v501
      %v522 = vsel %vm482, %v452, %v502
      %v523 = vsel %vm483, %v455, %v503
      %v524 = vsel %vm484, %v457, %v504
      %v525 = vsel %vm485, %v460, %v505
      %v526 = vsel %vm486, %v462, %v506
      %v527 = vsel %vm487, %v465, %v507
      %v528 = vsel %vm488, %v467, %v508
      %v529 = vpack.c.bf16 %v510, %v509
      %v530 = vpack.c.bf16 %v512, %v511
      %v531 = vpack.c.bf16 %v514, %v513
      %v532 = vpack.c.bf16 %v516, %v515
      %v533 = vpack.c.bf16 %v518, %v517
      %v534 = vpack.c.bf16 %v520, %v519
      %v535 = vpack.c.bf16 %v522, %v521
      %v536 = vpack.c.bf16 %v524, %v523
      %v537 = vpack.c.bf16 %v526, %v525
      %v538 = vpack.c.bf16 %v528, %v527
      %v539 = vld [vmem:[%s3] sm:$0xf]
      %v540 = vld [vmem:[%s3 + $0x4] sm:$0xf]
      %v541 = vld [vmem:[%s3 + $0x8] sm:$0xf]
      %v542 = vld [vmem:[%s3 + $0xc] sm:$0xf]
      %v543 = vld [vmem:[%s3 + $0x10] sm:$0xf]
      %v544 = vld [vmem:[%s3 + $0x14] sm:$0xf]
      %v545 = vld [vmem:[%s3 + $0x18] sm:$0xf]
      %v546 = vld [vmem:[%s3 + $0x1c] sm:$0xf]
      %v547 = vld [vmem:[%s4] sm:$0x1]
      %v549 = vperm.slane %v547, 0
      %v559 = vunpack.c.l.b16 %v539
      %v560 = vunpack.c.l.b16 %v540
      %v561 = vunpack.c.l.b16 %v541
      %v562 = vunpack.c.l.b16 %v542
      %v563 = vunpack.c.l.b16 %v543
      %v564 = vunpack.c.l.b16 %v544
      %v565 = vunpack.c.l.b16 %v545
      %v566 = vunpack.c.l.b16 %v546
      %v567 = vpack.c.b16 %v560, %v559
      %v568 = vpack.c.b16 %v562, %v561
      %v569 = vpack.c.b16 %v564, %v563
      %v570 = vpack.c.b16 %v566, %v565
      %vm575 = vcmask 523264
      %v577 = vsel %vm575, %v529, 0
      %v580 = vsel %vm575, %v530, 0
      %v583 = vsel %vm575, %v531, 0
      %v586 = vsel %vm575, %v532, 0
      %v589 = vsel %vm575, %v533, 0
      %v592 = vsel %vm575, %v534, 0
      %v595 = vsel %vm575, %v535, 0
      %v598 = vsel %vm575, %v536, 0
      %v601 = vsel %vm575, %v537, 0
      %v604 = vsel %vm575, %v538, 0
      %606 = vmatpush.bf16.msra.mxu0 0
      %607 = vmatpush.bf16.msra.mxu0 0
      %608 = vmatpush.bf16.msra.mxu0 0
      %609 = vmatpush.bf16.msra.mxu0 0
      %610 = vmatpush.bf16.msra.mxu0 %v570
      %611 = vmatpush.bf16.msra.mxu0 %v569
      %612 = vmatpush.bf16.msra.mxu0 %v568
      %613 = vmatpush.bf16.msra.mxu0 %v567
      %614 = vmatmul.bf16.gmra.mxu0 %v577
      %v615 = vpop.f32.mrf.mxu0
      %v616 = vadd.f32 %v549, %v615
      %v617 = vpop.f32.mrf.mxu0
      %v618 = vadd.f32 %v549, %v617
      %619 = vmatmul.bf16.gmra.mxu0 %v580
      %v620 = vpop.f32.mrf.mxu0
      %v621 = vadd.f32 %v549, %v620
      %v622 = vpop.f32.mrf.mxu0
      %v623 = vadd.f32 %v549, %v622
      %624 = vmatmul.bf16.gmra.mxu0 %v583
      %v625 = vpop.f32.mrf.mxu0
      %v626 = vadd.f32 %v549, %v625
      %v627 = vpop.f32.mrf.mxu0
      %v628 = vadd.f32 %v549, %v627
      %629 = vmatmul.bf16.gmra.mxu0 %v586
      %v630 = vpop.f32.mrf.mxu0
      %v631 = vadd.f32 %v549, %v630
      %v632 = vpop.f32.mrf.mxu0
      %v633 = vadd.f32 %v549, %v632
      %634 = vmatmul.bf16.gmra.mxu0 %v589
      %v635 = vpop.f32.mrf.mxu0
      %v636 = vadd.f32 %v549, %v635
      %v637 = vpop.f32.mrf.mxu0
      %v638 = vadd.f32 %v549, %v637
      %639 = vmatmul.bf16.gmra.mxu0 %v592
      %v640 = vpop.f32.mrf.mxu0
      %v641 = vadd.f32 %v549, %v640
      %v642 = vpop.f32.mrf.mxu0
      %v643 = vadd.f32 %v549, %v642
      %644 = vmatmul.bf16.gmra.mxu0 %v595
      %v645 = vpop.f32.mrf.mxu0
      %v646 = vadd.f32 %v549, %v645
      %v647 = vpop.f32.mrf.mxu0
      %v648 = vadd.f32 %v549, %v647
      %649 = vmatmul.bf16.gmra.mxu0 %v598
      %v650 = vpop.f32.mrf.mxu0
      %v651 = vadd.f32 %v549, %v650
      %v652 = vpop.f32.mrf.mxu0
      %v653 = vadd.f32 %v549, %v652
      %654 = vmatmul.bf16.gmra.mxu0 %v601
      %v655 = vpop.f32.mrf.mxu0
      %v656 = vadd.f32 %v549, %v655
      %v657 = vpop.f32.mrf.mxu0
      %v658 = vadd.f32 %v549, %v657
      %659 = vmatmul.bf16.gmra.mxu0 %v604
      %v660 = vpop.f32.mrf.mxu0
      %v661 = vadd.f32 %v549, %v660
      %v662 = vpop.f32.mrf.mxu0
      %v663 = vadd.f32 %v549, %v662
      %664 = vdwg.mxu0
      %vm665 = vcmp.gt.f32.partialorder %v616, 0.0
      %vm666 = vcmp.gt.f32.partialorder %v618, 0.0
      %vm667 = vcmp.gt.f32.partialorder %v621, 0.0
      %vm668 = vcmp.gt.f32.partialorder %v623, 0.0
      %vm669 = vcmp.gt.f32.partialorder %v626, 0.0
      %vm670 = vcmp.gt.f32.partialorder %v628, 0.0
      %vm671 = vcmp.gt.f32.partialorder %v631, 0.0
      %vm672 = vcmp.gt.f32.partialorder %v633, 0.0
      %vm673 = vcmp.gt.f32.partialorder %v636, 0.0
      %vm674 = vcmp.gt.f32.partialorder %v638, 0.0
      %vm675 = vcmp.gt.f32.partialorder %v641, 0.0
      %vm676 = vcmp.gt.f32.partialorder %v643, 0.0
      %vm677 = vcmp.gt.f32.partialorder %v646, 0.0
      %vm678 = vcmp.gt.f32.partialorder %v648, 0.0
      %vm679 = vcmp.gt.f32.partialorder %v651, 0.0
      %vm680 = vcmp.gt.f32.partialorder %v653, 0.0
      %vm681 = vcmp.gt.f32.partialorder %v656, 0.0
      %vm682 = vcmp.gt.f32.partialorder %v658, 0.0
      %vm683 = vcmp.gt.f32.partialorder %v661, 0.0
      %vm684 = vcmp.gt.f32.partialorder %v663, 0.0
      %v685 = vmul.f32 %v616, 0.2
      %v686 = vmul.f32 %v618, 0.2
      %v687 = vmul.f32 %v621, 0.2
      %v688 = vmul.f32 %v623, 0.2
      %v689 = vmul.f32 %v626, 0.2
      %v690 = vmul.f32 %v628, 0.2
      %v691 = vmul.f32 %v631, 0.2
      %v692 = vmul.f32 %v633, 0.2
      %v693 = vmul.f32 %v636, 0.2
      %v694 = vmul.f32 %v638, 0.2
      %v695 = vmul.f32 %v641, 0.2
      %v696 = vmul.f32 %v643, 0.2
      %v697 = vmul.f32 %v646, 0.2
      %v698 = vmul.f32 %v648, 0.2
      %v699 = vmul.f32 %v651, 0.2
      %v700 = vmul.f32 %v653, 0.2
      %v701 = vmul.f32 %v656, 0.2
      %v702 = vmul.f32 %v658, 0.2
      %v703 = vmul.f32 %v661, 0.2
      %v704 = vmul.f32 %v663, 0.2
      %v705 = vsel %vm665, %v616, %v685
      %v706 = vsel %vm666, %v618, %v686
      %v707 = vsel %vm667, %v621, %v687
      %v708 = vsel %vm668, %v623, %v688
      %v709 = vsel %vm669, %v626, %v689
      %v710 = vsel %vm670, %v628, %v690
      %v711 = vsel %vm671, %v631, %v691
      %v712 = vsel %vm672, %v633, %v692
      %v713 = vsel %vm673, %v636, %v693
      %v714 = vsel %vm674, %v638, %v694
      %v715 = vsel %vm675, %v641, %v695
      %v716 = vsel %vm676, %v643, %v696
      %v717 = vsel %vm677, %v646, %v697
      %v718 = vsel %vm678, %v648, %v698
      %v719 = vsel %vm679, %v651, %v699
      %v720 = vsel %vm680, %v653, %v700
      %v721 = vsel %vm681, %v656, %v701
      %v722 = vsel %vm682, %v658, %v702
      %v723 = vsel %vm683, %v661, %v703
      %v724 = vsel %vm684, %v663, %v704
      %v725 = vpack.c.bf16 %v706, %v705
      %v726 = vpack.c.bf16 %v708, %v707
      %v727 = vpack.c.bf16 %v710, %v709
      %v728 = vpack.c.bf16 %v712, %v711
      %v729 = vpack.c.bf16 %v714, %v713
      %v730 = vpack.c.bf16 %v716, %v715
      %v731 = vpack.c.bf16 %v718, %v717
      %v732 = vpack.c.bf16 %v720, %v719
      %v733 = vpack.c.bf16 %v722, %v721
      %v734 = vpack.c.bf16 %v724, %v723
      %v735 = vld [vmem:[%s5] sm:$0xf]
      %v736 = vld [vmem:[%s5 + $0x4] sm:$0xf]
      %v737 = vld [vmem:[%s5 + $0x8] sm:$0xf]
      %v738 = vld [vmem:[%s5 + $0xc] sm:$0xf]
      %v739 = vld [vmem:[%s5 + $0x10] sm:$0xf]
      %v740 = vld [vmem:[%s5 + $0x14] sm:$0xf]
      %v741 = vld [vmem:[%s5 + $0x18] sm:$0xf]
      %v742 = vld [vmem:[%s5 + $0x1c] sm:$0xf]
      %v743 = vld [vmem:[%s6] sm:$0x1]
      %v745 = vperm.slane %v743, 0
      %v755 = vunpack.c.l.b16 %v735
      %v756 = vunpack.c.l.b16 %v736
      %v757 = vunpack.c.l.b16 %v737
      %v758 = vunpack.c.l.b16 %v738
      %v759 = vunpack.c.l.b16 %v739
      %v760 = vunpack.c.l.b16 %v740
      %v761 = vunpack.c.l.b16 %v741
      %v762 = vunpack.c.l.b16 %v742
      %v763 = vpack.c.b16 %v756, %v755
      %v764 = vpack.c.b16 %v758, %v757
      %v765 = vpack.c.b16 %v760, %v759
      %v766 = vpack.c.b16 %v762, %v761
      %v772 = vsel %vm575, %v725, 0
      %v775 = vsel %vm575, %v726, 0
      %v778 = vsel %vm575, %v727, 0
      %v781 = vsel %vm575, %v728, 0
      %v784 = vsel %vm575, %v729, 0
      %v787 = vsel %vm575, %v730, 0
      %v790 = vsel %vm575, %v731, 0
      %v793 = vsel %vm575, %v732, 0
      %v796 = vsel %vm575, %v733, 0
      %v799 = vsel %vm575, %v734, 0
      %801 = vmatpush.bf16.msra.mxu0 0
      %802 = vmatpush.bf16.msra.mxu0 0
      %803 = vmatpush.bf16.msra.mxu0 0
      %804 = vmatpush.bf16.msra.mxu0 0
      %805 = vmatpush.bf16.msra.mxu0 %v766
      %806 = vmatpush.bf16.msra.mxu0 %v765
      %807 = vmatpush.bf16.msra.mxu0 %v764
      %808 = vmatpush.bf16.msra.mxu0 %v763
      %809 = vmatmul.bf16.gmra.mxu0 %v772
      %v810 = vpop.f32.mrf.mxu0
      %v811 = vadd.f32 %v745, %v810
      %v812 = vpop.f32.mrf.mxu0
      %v813 = vadd.f32 %v745, %v812
      %814 = vmatmul.bf16.gmra.mxu0 %v775
      %v815 = vpop.f32.mrf.mxu0
      %v816 = vadd.f32 %v745, %v815
      %v817 = vpop.f32.mrf.mxu0
      %v818 = vadd.f32 %v745, %v817
      %819 = vmatmul.bf16.gmra.mxu0 %v778
      %v820 = vpop.f32.mrf.mxu0
      %v821 = vadd.f32 %v745, %v820
      %v822 = vpop.f32.mrf.mxu0
      %v823 = vadd.f32 %v745, %v822
      %824 = vmatmul.bf16.gmra.mxu0 %v781
      %v825 = vpop.f32.mrf.mxu0
      %v826 = vadd.f32 %v745, %v825
      %v827 = vpop.f32.mrf.mxu0
      %v828 = vadd.f32 %v745, %v827
      %829 = vmatmul.bf16.gmra.mxu0 %v784
      %v830 = vpop.f32.mrf.mxu0
      %v831 = vadd.f32 %v745, %v830
      %v832 = vpop.f32.mrf.mxu0
      %v833 = vadd.f32 %v745, %v832
      %834 = vmatmul.bf16.gmra.mxu0 %v787
      %v835 = vpop.f32.mrf.mxu0
      %v836 = vadd.f32 %v745, %v835
      %v837 = vpop.f32.mrf.mxu0
      %v838 = vadd.f32 %v745, %v837
      %839 = vmatmul.bf16.gmra.mxu0 %v790
      %v840 = vpop.f32.mrf.mxu0
      %v841 = vadd.f32 %v745, %v840
      %v842 = vpop.f32.mrf.mxu0
      %v843 = vadd.f32 %v745, %v842
      %844 = vmatmul.bf16.gmra.mxu0 %v793
      %v845 = vpop.f32.mrf.mxu0
      %v846 = vadd.f32 %v745, %v845
      %v847 = vpop.f32.mrf.mxu0
      %v848 = vadd.f32 %v745, %v847
      %849 = vmatmul.bf16.gmra.mxu0 %v796
      %v850 = vpop.f32.mrf.mxu0
      %v851 = vadd.f32 %v745, %v850
      %v852 = vpop.f32.mrf.mxu0
      %v853 = vadd.f32 %v745, %v852
      %854 = vmatmul.bf16.gmra.mxu0 %v799
      %v855 = vpop.f32.mrf.mxu0
      %v856 = vadd.f32 %v745, %v855
      %v857 = vpop.f32.mrf.mxu0
      %v858 = vadd.f32 %v745, %v857
      %859 = vdwg.mxu0
      %vm860 = vcmp.gt.f32.partialorder %v811, 0.0
      %vm861 = vcmp.gt.f32.partialorder %v813, 0.0
      %vm862 = vcmp.gt.f32.partialorder %v816, 0.0
      %vm863 = vcmp.gt.f32.partialorder %v818, 0.0
      %vm864 = vcmp.gt.f32.partialorder %v821, 0.0
      %vm865 = vcmp.gt.f32.partialorder %v823, 0.0
      %vm866 = vcmp.gt.f32.partialorder %v826, 0.0
      %vm867 = vcmp.gt.f32.partialorder %v828, 0.0
      %vm868 = vcmp.gt.f32.partialorder %v831, 0.0
      %vm869 = vcmp.gt.f32.partialorder %v833, 0.0
      %vm870 = vcmp.gt.f32.partialorder %v836, 0.0
      %vm871 = vcmp.gt.f32.partialorder %v838, 0.0
      %vm872 = vcmp.gt.f32.partialorder %v841, 0.0
      %vm873 = vcmp.gt.f32.partialorder %v843, 0.0
      %vm874 = vcmp.gt.f32.partialorder %v846, 0.0
      %vm875 = vcmp.gt.f32.partialorder %v848, 0.0
      %vm876 = vcmp.gt.f32.partialorder %v851, 0.0
      %vm877 = vcmp.gt.f32.partialorder %v853, 0.0
      %vm878 = vcmp.gt.f32.partialorder %v856, 0.0
      %vm879 = vcmp.gt.f32.partialorder %v858, 0.0
      %v880 = vmul.f32 %v811, 0.2
      %v881 = vmul.f32 %v813, 0.2
      %v882 = vmul.f32 %v816, 0.2
      %v883 = vmul.f32 %v818, 0.2
      %v884 = vmul.f32 %v821, 0.2
      %v885 = vmul.f32 %v823, 0.2
      %v886 = vmul.f32 %v826, 0.2
      %v887 = vmul.f32 %v828, 0.2
      %v888 = vmul.f32 %v831, 0.2
      %v889 = vmul.f32 %v833, 0.2
      %v890 = vmul.f32 %v836, 0.2
      %v891 = vmul.f32 %v838, 0.2
      %v892 = vmul.f32 %v841, 0.2
      %v893 = vmul.f32 %v843, 0.2
      %v894 = vmul.f32 %v846, 0.2
      %v895 = vmul.f32 %v848, 0.2
      %v896 = vmul.f32 %v851, 0.2
      %v897 = vmul.f32 %v853, 0.2
      %v898 = vmul.f32 %v856, 0.2
      %v899 = vmul.f32 %v858, 0.2
      %v900 = vsel %vm860, %v811, %v880
      %v901 = vsel %vm861, %v813, %v881
      %v902 = vsel %vm862, %v816, %v882
      %v903 = vsel %vm863, %v818, %v883
      %v904 = vsel %vm864, %v821, %v884
      %v905 = vsel %vm865, %v823, %v885
      %v906 = vsel %vm866, %v826, %v886
      %v907 = vsel %vm867, %v828, %v887
      %v908 = vsel %vm868, %v831, %v888
      %v909 = vsel %vm869, %v833, %v889
      %v910 = vsel %vm870, %v836, %v890
      %v911 = vsel %vm871, %v838, %v891
      %v912 = vsel %vm872, %v841, %v892
      %v913 = vsel %vm873, %v843, %v893
      %v914 = vsel %vm874, %v846, %v894
      %v915 = vsel %vm875, %v848, %v895
      %v916 = vsel %vm876, %v851, %v896
      %v917 = vsel %vm877, %v853, %v897
      %v918 = vsel %vm878, %v856, %v898
      %v919 = vsel %vm879, %v858, %v899
      %v920 = vpack.c.bf16 %v901, %v900
      %v921 = vpack.c.bf16 %v903, %v902
      %v922 = vpack.c.bf16 %v905, %v904
      %v923 = vpack.c.bf16 %v907, %v906
      %v924 = vpack.c.bf16 %v909, %v908
      %v925 = vpack.c.bf16 %v911, %v910
      %v926 = vpack.c.bf16 %v913, %v912
      %v927 = vpack.c.bf16 %v915, %v914
      %v928 = vpack.c.bf16 %v917, %v916
      %v929 = vpack.c.bf16 %v919, %v918
      %v930 = vld [vmem:[%s7] sm:$0xf]
      %v931 = vld [vmem:[%s7 + $0x4] sm:$0xf]
      %v932 = vld [vmem:[%s7 + $0x8] sm:$0xf]
      %v933 = vld [vmem:[%s7 + $0xc] sm:$0xf]
      %v934 = vld [vmem:[%s7 + $0x10] sm:$0xf]
      %v935 = vld [vmem:[%s7 + $0x14] sm:$0xf]
      %v936 = vld [vmem:[%s7 + $0x18] sm:$0xf]
      %v937 = vld [vmem:[%s7 + $0x1c] sm:$0xf]
      %v938 = vld [vmem:[%s7 + $0x20] sm:$0xf]
      %v939 = vld [vmem:[%s7 + $0x24] sm:$0xf]
      %v940 = vld [vmem:[%s7 + $0x28] sm:$0xf]
      %v941 = vld [vmem:[%s7 + $0x2c] sm:$0xf]
      %v942 = vld [vmem:[%s7 + $0x30] sm:$0xf]
      %v943 = vld [vmem:[%s7 + $0x34] sm:$0xf]
      %v944 = vld [vmem:[%s7 + $0x38] sm:$0xf]
      %v945 = vld [vmem:[%s7 + $0x3c] sm:$0xf]
      %v946 = vld [vmem:[%s8] sm:$0x1]
      %v948 = vperm.slane %v946, 0
      %v966 = vunpack.c.l.b16 %v930
      %v967 = vunpack.c.l.b16 %v931
      %v968 = vunpack.c.l.b16 %v932
      %v969 = vunpack.c.l.b16 %v933
      %v970 = vunpack.c.l.b16 %v934
      %v971 = vunpack.c.l.b16 %v935
      %v972 = vunpack.c.l.b16 %v936
      %v973 = vunpack.c.l.b16 %v937
      %v974 = vunpack.c.l.b16 %v938
      %v975 = vunpack.c.l.b16 %v939
      %v976 = vunpack.c.l.b16 %v940
      %v977 = vunpack.c.l.b16 %v941
      %v978 = vunpack.c.l.b16 %v942
      %v979 = vunpack.c.l.b16 %v943
      %v980 = vunpack.c.l.b16 %v944
      %v981 = vunpack.c.l.b16 %v945
      %v982 = vpack.c.b16 %v967, %v966
      %v983 = vpack.c.b16 %v969, %v968
      %v984 = vpack.c.b16 %v971, %v970
      %v985 = vpack.c.b16 %v973, %v972
      %v986 = vpack.c.b16 %v975, %v974
      %v987 = vpack.c.b16 %v977, %v976
      %v988 = vpack.c.b16 %v979, %v978
      %v989 = vpack.c.b16 %v981, %v980
      %998 = vmatpush.bf16.msra.mxu0 %v989
      %999 = vmatpush.bf16.msra.mxu0 %v988
      %1000 = vmatpush.bf16.msra.mxu0 %v987
      %1001 = vmatpush.bf16.msra.mxu0 %v986
      %1002 = vmatpush.bf16.msra.mxu0 %v985
      %1003 = vmatpush.bf16.msra.mxu0 %v984
      %1004 = vmatpush.bf16.msra.mxu0 %v983
      %1005 = vmatpush.bf16.msra.mxu0 %v982
      %1006 = vmatmul.bf16.gmra.mxu0 %v920
      %v1007 = vpop.f32.mrf.mxu0
      %v1008 = vadd.f32 %v948, %v1007
      %v1009 = vpop.f32.mrf.mxu0
      %v1010 = vadd.f32 %v948, %v1009
      %1011 = vmatmul.bf16.gmra.mxu0 %v921
      %v1012 = vpop.f32.mrf.mxu0
      %v1013 = vadd.f32 %v948, %v1012
      %v1014 = vpop.f32.mrf.mxu0
      %v1015 = vadd.f32 %v948, %v1014
      %1016 = vmatmul.bf16.gmra.mxu0 %v922
      %v1017 = vpop.f32.mrf.mxu0
      %v1018 = vadd.f32 %v948, %v1017
      %v1019 = vpop.f32.mrf.mxu0
      %v1020 = vadd.f32 %v948, %v1019
      %1021 = vmatmul.bf16.gmra.mxu0 %v923
      %v1022 = vpop.f32.mrf.mxu0
      %v1023 = vadd.f32 %v948, %v1022
      %v1024 = vpop.f32.mrf.mxu0
      %v1025 = vadd.f32 %v948, %v1024
      %1026 = vmatmul.bf16.gmra.mxu0 %v924
      %v1027 = vpop.f32.mrf.mxu0
      %v1028 = vadd.f32 %v948, %v1027
      %v1029 = vpop.f32.mrf.mxu0
      %v1030 = vadd.f32 %v948, %v1029
      %1031 = vmatmul.bf16.gmra.mxu0 %v925
      %v1032 = vpop.f32.mrf.mxu0
      %v1033 = vadd.f32 %v948, %v1032
      %v1034 = vpop.f32.mrf.mxu0
      %v1035 = vadd.f32 %v948, %v1034
      %1036 = vmatmul.bf16.gmra.mxu0 %v926
      %v1037 = vpop.f32.mrf.mxu0
      %v1038 = vadd.f32 %v948, %v1037
      %v1039 = vpop.f32.mrf.mxu0
      %v1040 = vadd.f32 %v948, %v1039
      %1041 = vmatmul.bf16.gmra.mxu0 %v927
      %v1042 = vpop.f32.mrf.mxu0
      %v1043 = vadd.f32 %v948, %v1042
      %v1044 = vpop.f32.mrf.mxu0
      %v1045 = vadd.f32 %v948, %v1044
      %1046 = vmatmul.bf16.gmra.mxu0 %v928
      %v1047 = vpop.f32.mrf.mxu0
      %v1048 = vadd.f32 %v948, %v1047
      %v1049 = vpop.f32.mrf.mxu0
      %v1050 = vadd.f32 %v948, %v1049
      %1051 = vmatmul.bf16.gmra.mxu0 %v929
      %v1052 = vpop.f32.mrf.mxu0
      %v1053 = vadd.f32 %v948, %v1052
      %v1054 = vpop.f32.mrf.mxu0
      %v1055 = vadd.f32 %v948, %v1054
      %1056 = vdwg.mxu0
      %vm1057 = vcmp.gt.f32.partialorder %v1008, 0.0
      %vm1058 = vcmp.gt.f32.partialorder %v1010, 0.0
      %vm1059 = vcmp.gt.f32.partialorder %v1013, 0.0
      %vm1060 = vcmp.gt.f32.partialorder %v1015, 0.0
      %vm1061 = vcmp.gt.f32.partialorder %v1018, 0.0
      %vm1062 = vcmp.gt.f32.partialorder %v1020, 0.0
      %vm1063 = vcmp.gt.f32.partialorder %v1023, 0.0
      %vm1064 = vcmp.gt.f32.partialorder %v1025, 0.0
      %vm1065 = vcmp.gt.f32.partialorder %v1028, 0.0
      %vm1066 = vcmp.gt.f32.partialorder %v1030, 0.0
      %vm1067 = vcmp.gt.f32.partialorder %v1033, 0.0
      %vm1068 = vcmp.gt.f32.partialorder %v1035, 0.0
      %vm1069 = vcmp.gt.f32.partialorder %v1038, 0.0
      %vm1070 = vcmp.gt.f32.partialorder %v1040, 0.0
      %vm1071 = vcmp.gt.f32.partialorder %v1043, 0.0
      %vm1072 = vcmp.gt.f32.partialorder %v1045, 0.0
      %vm1073 = vcmp.gt.f32.partialorder %v1048, 0.0
      %vm1074 = vcmp.gt.f32.partialorder %v1050, 0.0
      %vm1075 = vcmp.gt.f32.partialorder %v1053, 0.0
      %vm1076 = vcmp.gt.f32.partialorder %v1055, 0.0
      %v1077 = vmul.f32 %v1008, 0.2
      %v1078 = vmul.f32 %v1010, 0.2
      %v1079 = vmul.f32 %v1013, 0.2
      %v1080 = vmul.f32 %v1015, 0.2
      %v1081 = vmul.f32 %v1018, 0.2
      %v1082 = vmul.f32 %v1020, 0.2
      %v1083 = vmul.f32 %v1023, 0.2
      %v1084 = vmul.f32 %v1025, 0.2
      %v1085 = vmul.f32 %v1028, 0.2
      %v1086 = vmul.f32 %v1030, 0.2
      %v1087 = vmul.f32 %v1033, 0.2
      %v1088 = vmul.f32 %v1035, 0.2
      %v1089 = vmul.f32 %v1038, 0.2
      %v1090 = vmul.f32 %v1040, 0.2
      %v1091 = vmul.f32 %v1043, 0.2
      %v1092 = vmul.f32 %v1045, 0.2
      %v1093 = vmul.f32 %v1048, 0.2
      %v1094 = vmul.f32 %v1050, 0.2
      %v1095 = vmul.f32 %v1053, 0.2
      %v1096 = vmul.f32 %v1055, 0.2
      %v1097 = vsel %vm1057, %v1008, %v1077
      %v1098 = vsel %vm1058, %v1010, %v1078
      %v1099 = vsel %vm1059, %v1013, %v1079
      %v1100 = vsel %vm1060, %v1015, %v1080
      %v1101 = vsel %vm1061, %v1018, %v1081
      %v1102 = vsel %vm1062, %v1020, %v1082
      %v1103 = vsel %vm1063, %v1023, %v1083
      %v1104 = vsel %vm1064, %v1025, %v1084
      %v1105 = vsel %vm1065, %v1028, %v1085
      %v1106 = vsel %vm1066, %v1030, %v1086
      %v1107 = vsel %vm1067, %v1033, %v1087
      %v1108 = vsel %vm1068, %v1035, %v1088
      %v1109 = vsel %vm1069, %v1038, %v1089
      %v1110 = vsel %vm1070, %v1040, %v1090
      %v1111 = vsel %vm1071, %v1043, %v1091
      %v1112 = vsel %vm1072, %v1045, %v1092
      %v1113 = vsel %vm1073, %v1048, %v1093
      %v1114 = vsel %vm1074, %v1050, %v1094
      %v1115 = vsel %vm1075, %v1053, %v1095
      %v1116 = vsel %vm1076, %v1055, %v1096
      %vm1117 = vcmask 261120
      %1118 = vst.msk [vmem:[%s334] sm:$0xff] %vm1117, %v1097
      %1119 = vst.msk [vmem:[%s334 + $0x8] sm:$0xff] %vm1117, %v1098
      %1120 = vst.msk [vmem:[%s334 + $0x10] sm:$0xff] %vm1117, %v1099
      %1121 = vst.msk [vmem:[%s334 + $0x18] sm:$0xff] %vm1117, %v1100
      %1122 = vst.msk [vmem:[%s334 + $0x20] sm:$0xff] %vm1117, %v1101
      %1123 = vst.msk [vmem:[%s334 + $0x28] sm:$0xff] %vm1117, %v1102
      %1124 = vst.msk [vmem:[%s334 + $0x30] sm:$0xff] %vm1117, %v1103
      %1125 = vst.msk [vmem:[%s334 + $0x38] sm:$0xff] %vm1117, %v1104
      %1126 = vst.msk [vmem:[%s334 + $0x40] sm:$0xff] %vm1117, %v1105
      %1127 = vst.msk [vmem:[%s334 + $0x48] sm:$0xff] %vm1117, %v1106
      %1128 = vst.msk [vmem:[%s334 + $0x50] sm:$0xff] %vm1117, %v1107
      %1129 = vst.msk [vmem:[%s334 + $0x58] sm:$0xff] %vm1117, %v1108
      %1130 = vst.msk [vmem:[%s334 + $0x60] sm:$0xff] %vm1117, %v1109
      %1131 = vst.msk [vmem:[%s334 + $0x68] sm:$0xff] %vm1117, %v1110
      %1132 = vst.msk [vmem:[%s334 + $0x70] sm:$0xff] %vm1117, %v1111
      %1133 = vst.msk [vmem:[%s334 + $0x78] sm:$0xff] %vm1117, %v1112
      %1134 = vst.msk [vmem:[%s334 + $0x80] sm:$0xff] %vm1117, %v1113
      %1135 = vst.msk [vmem:[%s334 + $0x88] sm:$0xff] %vm1117, %v1114
      %1136 = vst.msk [vmem:[%s334 + $0x90] sm:$0xff] %vm1117, %v1115
      %1137 = vst.msk [vmem:[%s334 + $0x98] sm:$0xff] %vm1117, %v1116
      %s1138 = smul.u32 20, %s20
      %p1139 = scmp.lt.s32.totalorder %s1138, 39
      %s1140 = scalar_select %p1139, %s1138, 39
      %s1141 = smul.addr %s1140, 8
      %s1142 = scalar_lea.vmem %s9, %s1141
      // Predicated region
      $region57: #{tpu_custom_call.1} parent=55 // pred_check
        %p1143 = pneg %p232
      $region58: #{tpu_custom_call.1} parent=55 // pred_check_branch
        %1145 = sbr.rel (%p1143) target = $region60
      $region59: #{tpu_custom_call.1} parent=55 // pred_region
        %s1146 = smul.u32 20, %s20
      $region60: #{tpu_custom_call.1} parent=55 // pred_fallthru
        _
    $region56: #{tpu_custom_call.1} parent=5 // pred_fallthru
      _
    %p1147 = scmp.le.s32.totalorder 2, %s15
    // Predicated region
    $region61: #{tpu_custom_call.1} parent=5 // pred_check
      %p1148 = pneg %p1147
    $region62: #{tpu_custom_call.1} parent=5 // pred_check_branch
      %1150 = sbr.rel (%p1148) target = $region64
    $region63: #{tpu_custom_call.1} parent=5 // pred_region
      %s1151 = ssub.s32 %s15, 2
      // Predicated region
      $region65: #{tpu_custom_call.1} parent=63 // pred_check
        %p1152 = pneg %p238
      $region66: #{tpu_custom_call.1} parent=63 // pred_check_branch
        %1154 = sbr.rel (%p1152) target = $region68
      $region67: #{tpu_custom_call.1} parent=63 // pred_region
        %s1155 = smul.u32 20, %s21
        %p1156 = scmp.lt.s32.totalorder %s1155, 39
        %s1157 = scalar_select %p1156, %s1155, 39
        %s1158 = smul.addr %s1157, 8
        %s1159 = scalar_lea.vmem %s9, %s1158
      $region68: #{tpu_custom_call.1} parent=63 // pred_fallthru
        _
    $region64: #{tpu_custom_call.1} parent=5 // pred_fallthru
      _
  $region6: #{tpu_custom_call.1} parent=0 // loop_footer
    %s19 = sadd.s32 1, %s15
  $region7: #{tpu_custom_call.1} parent=0 // loop_footer_branch
    %14 = sbr.rel target = $region3
  $region8: #{tpu_custom_call.1} parent=0 // loop_exit
    _

</llo_original>
